<compile_context>
chip_gen: v7x
topology: tpu7x:2x2x1
jax: 0.10.0
libtpu: 0.0.40
codegen_flags: <defaults>
</compile_context>

<pallas_src>
import math

import numpy as np

import jax
import jax.numpy as jnp
from jax.experimental import pallas as pl
from jax.experimental.pallas import tpu as pltpu


# ----------------------------------------------------------------------------
# Static bicubic (align_corners=True, a=-0.75) interpolation matrices, matching
# torch.nn.Upsample(scale_factor=2, mode='bicubic', align_corners=True).
# Built once in numpy (host constants).
# ----------------------------------------------------------------------------
def _cubic_coeffs(t, A=-0.75):
    def c1(x):  # |x| <= 1
        return ((A + 2.0) * x - (A + 3.0)) * x * x + 1.0

    def c2(x):  # 1 < |x| < 2
        return ((A * x - 5.0 * A) * x + 8.0 * A) * x - 4.0 * A

    return np.array([c2(t + 1.0), c1(t), c1(1.0 - t), c2(2.0 - t)], dtype=np.float64)


def bicubic_upsample_matrix(n_in, n_out):
    """U (numpy, float32) such that out = U @ in (1-D, align_corners=True, clamped)."""
    # TODO(synk): construction matches PyTorch's bicubic (A=-0.75, clamped borders,
    # align_corners=True source mapping); verified analytically, not against torch here.
    U = np.zeros((n_out, n_in), dtype=np.float64)
    for i in range(n_out):
        src = (i * (n_in - 1) / (n_out - 1)) if n_out > 1 else 0.0
        i0 = int(np.floor(src))
        t = src - i0
        coeffs = _cubic_coeffs(t)
        for k in range(4):
            idx = min(max(i0 - 1 + k, 0), n_in - 1)
            U[i, idx] += coeffs[k]
    return U.astype(np.float32)


# ----------------------------------------------------------------------------
# Hardware-aware helpers
# ----------------------------------------------------------------------------
def _vmem_capacity_bytes(default=64 * 1024 * 1024):
    """Physical VMEM bytes; conservative 64 MiB fallback (v7x-sized) if query fails."""
    try:
        return int(getattr(pltpu.get_tpu_info(), "vmem_capacity_bytes", default))
    except Exception:
        return default


def _tile_row_candidates(H, W):
    """Row-tile sizes TH with H % TH == 0 and a lane-dense (multiple-of-128 or full)
    flattened tile width TH*W."""
    return sorted(d for d in range(1, H + 1)
                  if H % d == 0 and ((d * W) % 128 == 0 or d == H))


def _pick_tile_rows(H, W, C, budget_bytes):
    """Largest valid TH whose streamed bf16 x tile (C * TH*W * 2 B) fits the budget."""
    cands = _tile_row_candidates(H, W)
    fitting = [d for d in cands if C * d * W * 2 <= budget_bytes]
    return max(fitting) if fitting else min(cands)


# ----------------------------------------------------------------------------
# Pallas kernel: one grid step per (batch, row-tile).
#   wmod_ref : (1, 3, C)  bf16   per-sample modulated 1x1 conv weight
#   bias_ref : (3, 1)     f32    ToRGB bias
#   x_ref    : (1, C, T)  bf16   flattened spatial tile of the input (T = TH*W)
#   skip_ref : (1, 3, T)  bf16   bicubically-upsampled skip, flattened, same tile
#   out_ref  : (1, 3, T)  f32
# One MXU matmul (bf16 in, f32 acc) + one VPU add + ONE lane-dense store.
# ----------------------------------------------------------------------------
def torgb_kernel(wmod_ref, bias_ref, x_ref, skipup_ref, out_ref):
    rgb = jnp.dot(wmod_ref[0], x_ref[0], preferred_element_type=jnp.float32)   # (3, T)
    out_ref[0] = (rgb + bias_ref[...] + skipup_ref[0].astype(jnp.float32)
                  ).astype(out_ref.dtype)


# ----------------------------------------------------------------------------
# Wrapper (parameter prep, upsample hoist, tiling, BlockSpecs)
# ----------------------------------------------------------------------------
def to_rgb_with_upsample(x, style, skip, params, *, tile_rows=None,
                         out_dtype=jnp.float32):
    B, C, H, W = x.shape
    Bs, Cs, Hs, Ws = skip.shape
    assert Bs == B and Cs == 3 and H == 2 * Hs and W == 2 * Ws
    HW = H * W

    # --- EqualLinear modulation + weight modulation, hoisted (f32 math) ---
    eqw = (params["mod_weight"].astype(jnp.float32) * params["eq_scale"]).T        # (Wd, C)
    eqb = params["mod_bias"].astype(jnp.float32) * params["lr_mul"]                # (C,)
    s = style.astype(jnp.float32) @ eqw + eqb                                      # (B, C)
    convw = (params["conv_scale"]
             * params["conv_weight"][0, :, :, 0, 0]).astype(jnp.float32)           # (3, C)
    w_mod = (convw[None, :, :] * s[:, None, :]).astype(jnp.bfloat16)               # (B, 3, C)
    bias = params["rgb_bias"].reshape(3, 1).astype(jnp.float32)

    # --- full bicubic x2 upsample of the 3-channel skip, hoisted, exact f32 ---
    Uh = jnp.asarray(bicubic_upsample_matrix(Hs, H), jnp.float32)                  # (H, Hs)
    Uw = jnp.asarray(bicubic_upsample_matrix(Ws, W), jnp.float32)                  # (W, Ws)
    skip_h = jnp.einsum("hp,bcpq->bchq", Uh, skip.astype(jnp.float32))             # H-pass
    skip_up = jnp.einsum("bchq,wq->bchw", skip_h, Uw)                              # W-pass
    skip_up = skip_up.reshape(B, 3, HW).astype(jnp.bfloat16)                       # (B, 3, HW)

    # --- flatten spatial to the lane axis; stream activations in bf16 ---
    x2 = x.reshape(B, C, HW).astype(jnp.bfloat16)

    # --- generation-aware tile pick + >=2 grid steps (keeps both v7x TCs busy) ---
    vmem_cap = _vmem_capacity_bytes()
    if tile_rows is None:
        budget = max(1 << 20, vmem_cap // 16)   # ~8 MiB on 128 MiB parts, ~4 MiB on v7x
        TH = _pick_tile_rows(H, W, C, budget)
        if B * (H // TH) < 2:
            smaller = [d for d in _tile_row_candidates(H, W) if d < H]
            if smaller:
                TH = max(smaller)
    else:
        TH = tile_rows
    assert H % TH == 0
    assert ((TH * W) % 128 == 0) or TH == H
    T = TH * W
    NS = H // TH

    # --- VMEM limit from actual (double-buffered) blocks, capped per generation ---
    out_itemsize = np.dtype(out_dtype).itemsize
    blk = (2 * (C * T * 2)            # x tile, double-buffered, bf16
           + 2 * (3 * T * 2)          # skip_up tile, double-buffered, bf16
           + 2 * (3 * T * out_itemsize)   # out tile, double-buffered
           + 2 * (3 * C * 2 + 3 * 4))     # resident params
    vmem_limit = int(min(0.75 * vmem_cap,
                         max(16 * 1024 * 1024, blk + 4 * 1024 * 1024)))

    out2 = pl.pallas_call(
        torgb_kernel,
        out_shape=jax.ShapeDtypeStruct((B, 3, HW), out_dtype),
        grid_spec=pltpu.PrefetchScalarGridSpec(
            num_scalar_prefetch=0,
            grid=(B, NS),
            in_specs=[
                pl.BlockSpec((1, 3, C), lambda b, j: (b, 0, 0)),   # w_mod (per sample)
                pl.BlockSpec((3, 1), lambda b, j: (0, 0)),         # rgb bias
                pl.BlockSpec((1, C, T), lambda b, j: (b, 0, j)),   # x tile
                pl.BlockSpec((1, 3, T), lambda b, j: (b, 0, j)),   # upsampled skip tile
            ],
            out_specs=pl.BlockSpec((1, 3, T), lambda b, j: (b, 0, j)),
        ),
        compiler_params=pltpu.CompilerParams(
            dimension_semantics=("parallel", "parallel"),
            vmem_limit_bytes=vmem_limit,
        ),
    )(w_mod, bias, x2, skip_up)

    return out2.reshape(B, 3, H, W)


# ----------------------------------------------------------------------------
# Pure-JAX f32 reference (mirrors the PyTorch forward math for verification)
# ----------------------------------------------------------------------------
def reference(x, style, skip, params):
    B, C, H, W = x.shape
    _, _, Hs, Ws = skip.shape
    s = style @ (params["mod_weight"] * params["eq_scale"]).T \
        + params["mod_bias"] * params["lr_mul"]                      # (B, C)
    w = params["conv_scale"] * params["conv_weight"][0, :, :, 0, 0][None] \
        * s[:, None, :]                                              # (B, 3, C)
    rgb = jnp.einsum("boc,bchw->bohw", w, x) + params["rgb_bias"]    # (B, 3, H, W)
    Uh = jnp.asarray(bicubic_upsample_matrix(Hs, H))
    Uw = jnp.asarray(bicubic_upsample_matrix(Ws, W))
    up = jnp.einsum("hp,bopq,wq->bohw", Uh, skip, Uw)                # (B, 3, H, W)
    return rgb + up


if __name__ == "__main__":
    B, C, Wd = 2, 8, 32
    H = W = 16
    Hs = Ws = 8  # skip is at half resolution; upsampled x2 to match conv output

    key = jax.random.PRNGKey(0)
    k1, k2, k3, k4, k5 = jax.random.split(key, 5)

    lr_mul = 1.0
    params = dict(
        mod_weight=jax.random.normal(k1, (C, Wd), jnp.float32) / lr_mul,  # EqualLinear weight
        mod_bias=jnp.full((C,), 1.0, jnp.float32),                        # bias_init=1
        eq_scale=(1.0 / math.sqrt(Wd)) * lr_mul,
        lr_mul=lr_mul,
        conv_weight=jax.random.normal(k2, (1, 3, C, 1, 1), jnp.float32),  # ModulatedConv2d weight
        conv_scale=1.0 / math.sqrt(C * 1 * 1),                            # fan_in = C*k^2, k=1
        rgb_bias=jnp.zeros((1, 3, 1, 1), jnp.float32),                    # ToRGB bias
    )

    x = jax.random.normal(k3, (B, C, H, W), jnp.float32)
    style = jax.random.normal(k4, (B, Wd), jnp.float32)
    skip = jax.random.normal(k5, (B, 3, Hs, Ws), jnp.float32)

    ref = jax.block_until_ready(reference(x, style, skip, params))

    # 1) explicit tiling path: tile_rows=8 -> T=128, grid=(2, 2)
    out_tiled = jax.block_until_ready(
        to_rgb_with_upsample(x, style, skip, params, tile_rows=8))
    # 2) auto path (generation-aware tile pick)
    out_auto = jax.block_until_ready(
        to_rgb_with_upsample(x, style, skip, params))

    # Loose tolerance: x / skip_up / w_mod are streamed in bf16 (f32 accumulation);
    # reference is pure f32.
    np.testing.assert_allclose(np.asarray(out_tiled), np.asarray(ref), rtol=5e-2, atol=5e-2)
    np.testing.assert_allclose(np.asarray(out_auto), np.asarray(ref), rtol=5e-2, atol=5e-2)

    print("KERNEL_OK")
</pallas_src>

<mosaic_0001>
module attributes {stable_mosaic.version = 11 : i64} {
  func.func @torgb_kernel(%arg0: i32, %arg1: i32, %arg2: memref<1x3x8xbf16, #tpu.memory_space<vmem>>, %arg3: memref<3x1xf32, #tpu.memory_space<vmem>>, %arg4: memref<1x8x128xbf16, #tpu.memory_space<vmem>>, %arg5: memref<1x3x128xbf16, #tpu.memory_space<vmem>>, %arg6: memref<1x3x128xf32, #tpu.memory_space<vmem>>) attributes {dimension_semantics = [#tpu.dimension_semantics<parallel>, #tpu.dimension_semantics<parallel>], iteration_bounds = array<i64: 2, 2>, scalar_prefetch = 0 : i64, scratch_operands = 0 : i64, tpu.core_type = #tpu.core_type<tc>, window_params = [{transform_indices = @transform_0, window_bounds = array<i64: 1, 3, 8>}, {pipeline_mode = #tpu.pipeline_mode<synchronous>, transform_indices = @transform_1, window_bounds = array<i64: 3, 1>}, {transform_indices = @transform_2, window_bounds = array<i64: 1, 8, 128>}, {transform_indices = @transform_3, window_bounds = array<i64: 1, 3, 128>}, {transform_indices = @transform_4, window_bounds = array<i64: 1, 3, 128>}]} {
    %c0 = arith.constant 0 : index
    %c0_0 = arith.constant 0 : index
    %c0_1 = arith.constant 0 : index
    %0 = vector.load %arg2[%c0, %c0_0, %c0_1] : memref<1x3x8xbf16, #tpu.memory_space<vmem>>, vector<1x3x8xbf16>
    %1 = vector.shape_cast %0 : vector<1x3x8xbf16> to vector<3x8xbf16>
    %c0_2 = arith.constant 0 : index
    %c0_3 = arith.constant 0 : index
    %c0_4 = arith.constant 0 : index
    %2 = vector.load %arg4[%c0_2, %c0_3, %c0_4] : memref<1x8x128xbf16, #tpu.memory_space<vmem>>, vector<1x8x128xbf16>
    %3 = vector.shape_cast %2 : vector<1x8x128xbf16> to vector<8x128xbf16>
    %cst = arith.constant dense<0.000000e+00> : vector<3x128xf32>
    %4 = tpu.matmul %1, %3, %cst {dimension_numbers = #tpu.dot_dimension_numbers<[1], [0], [0], [1], [0, 0, 1, 1], [], []>} : vector<3x8xbf16>, vector<8x128xbf16>, vector<3x128xf32> -> vector<3x128xf32>
    %c0_5 = arith.constant 0 : index
    %c0_6 = arith.constant 0 : index
    %5 = vector.load %arg3[%c0_5, %c0_6] : memref<3x1xf32, #tpu.memory_space<vmem>>, vector<3x1xf32>
    %6 = vector.broadcast %5 : vector<3x1xf32> to vector<3x128xf32>
    %7 = arith.addf %4, %6 : vector<3x128xf32>
    %c0_7 = arith.constant 0 : index
    %c0_8 = arith.constant 0 : index
    %c0_9 = arith.constant 0 : index
    %8 = vector.load %arg5[%c0_7, %c0_8, %c0_9] : memref<1x3x128xbf16, #tpu.memory_space<vmem>>, vector<1x3x128xbf16>
    %9 = vector.shape_cast %8 : vector<1x3x128xbf16> to vector<3x128xbf16>
    %10 = arith.extf %9 : vector<3x128xbf16> to vector<3x128xf32>
    %11 = arith.addf %7, %10 : vector<3x128xf32>
    %c0_10 = arith.constant 0 : index
    %c0_11 = arith.constant 0 : index
    %c0_12 = arith.constant 0 : index
    %12 = vector.load %arg6[%c0_10, %c0_11, %c0_12] : memref<1x3x128xf32, #tpu.memory_space<vmem>>, vector<1x3x128xf32>
    %13 = vector.shape_cast %12 : vector<1x3x128xf32> to vector<3x128xf32>
    %14 = vector.shape_cast %11 : vector<3x128xf32> to vector<1x3x128xf32>
    tpu.vector_store %arg6[%c0_10, %c0_11, %c0_12], %14 {strides = array<i32>} : memref<1x3x128xf32, #tpu.memory_space<vmem>>, vector<1x3x128xf32>,
    return
  }
  func.func @transform_0(%arg0: i32, %arg1: i32) -> (i32, i32, i32) {
    %c0_i32 = arith.constant 0 : i32
    %c0_i32_0 = arith.constant 0 : i32
    %c0_i32_1 = arith.constant 0 : i32
    return %arg0, %c0_i32, %c0_i32_0 : i32, i32, i32
  }
  func.func @transform_1(%arg0: i32, %arg1: i32) -> (i32, i32) {
    %c0_i32 = arith.constant 0 : i32
    %c0_i32_0 = arith.constant 0 : i32
    %c0_i32_1 = arith.constant 0 : i32
    return %c0_i32, %c0_i32_0 : i32, i32
  }
  func.func @transform_2(%arg0: i32, %arg1: i32) -> (i32, i32, i32) {
    %c0_i32 = arith.constant 0 : i32
    %c0_i32_0 = arith.constant 0 : i32
    return %arg0, %c0_i32, %arg1 : i32, i32, i32
  }
  func.func @transform_3(%arg0: i32, %arg1: i32) -> (i32, i32, i32) {
    %c0_i32 = arith.constant 0 : i32
    %c0_i32_0 = arith.constant 0 : i32
    return %arg0, %c0_i32, %arg1 : i32, i32, i32
  }
  func.func @transform_4(%arg0: i32, %arg1: i32) -> (i32, i32, i32) {
    %c0_i32 = arith.constant 0 : i32
    %c0_i32_0 = arith.constant 0 : i32
    return %arg0, %c0_i32, %arg1 : i32, i32, i32
  }
}

</mosaic_0001>

<llo_original>
// kernel: tpu_custom_call.1
$region0: #{tpu_custom_call.1}
  #allocation0 [shape = 'u32[]', space=smem, size = 0x4, offset = 0x4, fixed_abs, tag = 'smem constant byte address 0x4 - core index']
  #allocation1 [shape = 'u32[144,128]{1,0:T(1,128)}', space=vmem, size = 0x12000, scoped, tag = 'internal scratch']
  %s0 = inlined_call_operand.vmem [shape: bf16[2,3,8], index: 0, kind: input, shape index: {}]
  %s1 = inlined_call_operand.vmem [shape: f32[3,1], index: 1, kind: input, shape index: {}]
  %s2 = inlined_call_operand.vmem [shape: bf16[2,8,256], index: 2, kind: input, shape index: {}]
  %s3 = inlined_call_operand.vmem [shape: bf16[2,3,256], index: 3, kind: input, shape index: {}]
  %s4 = inlined_call_operand.vmem [shape: f32[2,3,256], index: 4, kind: output, shape index: {}]
  %s5 = sld [smem:[#allocation0]]
  $region49: #{tpu_custom_call.1} parent=0
    _
  %s7 = ssub.s32 1, %s5
  %s8 = scalar_select 0, %s7, %s5
  loop: start=0, step=1, limit=6
  $region2: #{tpu_custom_call.1} parent=0 // loop_pre_header
    _
  $region3: #{tpu_custom_call.1} parent=0 // loop_header
    %s10 = sphi 0, %s14
    %p11 = scmp.ge.s32.totalorder %s10, 6
    %s17 = sphi 0, %s29
    %s18 = sphi 0, %s25
    %s19 = sphi 0, %s17
    %s20 = sphi 0, %s18
    %s21 = sphi 0, %s19
    %s22 = sphi 0, %s20
    %s32 = sphi 0, %s34
    %s35 = sphi 0, %s32
    %s36 = sphi 0, %s35
    %s52 = sphi 0, %s36
    %s56 = sphi 0, %s56
    %s58 = sphi 0, %s56
    %s59 = sphi 0, %s58
    %s73 = sphi 0, %s59
    %s81 = sphi 0, %s83
    %s84 = sphi 0, %s81
    %s85 = sphi 0, %s84
    %s101 = sphi 0, %s85
    %s109 = sphi 0, %s111
    %s112 = sphi 0, %s109
    %s113 = sphi 0, %s112
    %s129 = sphi 0, %s113
    %s137 = sphi 0, %s139
    %s140 = sphi 0, %s137
    %s141 = sphi 0, %s140
    %s157 = sphi 0, %s141
  $region4: #{tpu_custom_call.1} parent=0 // loop_header_branch
    %13 = sbr.rel (%p11) target = $region8
  $region5: #{tpu_custom_call.1} parent=0 // loop_body
    %s15 = ssub.s32 %s10, 1
    %s16 = ssub.s32 %s10, 2
    %s23 = sadd.s32 1, %s18
    %p24 = scmp.ge.s32.totalorder %s23, 2
    %s25 = scalar_select %p24, 0, %s23
    %s26 = sadd.s32 1, %s17
    %s27 = scalar_select %p24, %s26, %s17
    %p28 = scmp.ge.s32.totalorder %s27, 2
    %s29 = scalar_select %p28, 0, %s27
    %s30 = ssub.s32 %s17, %s29
    %p31 = scmp.eq.s32.totalorder %s30, 0
    %s33 = sadd.s32 %s32, 1
    %s34 = scalar_select %p31, %s32, %s33
    %p37 = pneg %p31
    %p38 = scmp.eq.s32.totalorder %s10, 3
    %p39 = por %p37, %p38
    %p40 = scmp.ne.s32.totalorder %s32, %s35
    %p41 = scmp.eq.s32.totalorder %s10, 0
    %p42 = por %p40, %p41
    %p43 = scmp.ne.s32.totalorder %s32, %s35
    %p44 = scmp.eq.s32.totalorder %s15, 3
    %p45 = por %p43, %p44
    %p46 = scmp.ne.s32.totalorder %s35, %s36
    %p47 = scmp.eq.s32.totalorder %s15, 0
    %p48 = por %p46, %p47
    %p49 = scmp.ne.s32.totalorder %s35, %s36
    %p50 = scmp.eq.s32.totalorder %s16, 3
    %p51 = por %p49, %p50
    %p53 = scmp.ne.s32.totalorder %s36, %s52
    %p54 = scmp.eq.s32.totalorder %s16, 0
    %p55 = por %p53, %p54
    %s57 = sadd.s32 %s56, 1
    %p60 = scmp.eq.s32.totalorder %s10, 3
    %p61 = scmp.ne.s32.totalorder %s56, %s58
    %p62 = scmp.eq.s32.totalorder %s10, 0
    %p63 = por %p61, %p62
    %p64 = scmp.ne.s32.totalorder %s56, %s58
    %p65 = scmp.eq.s32.totalorder %s15, 3
    %p66 = por %p64, %p65
    %p67 = scmp.ne.s32.totalorder %s58, %s59
    %p68 = scmp.eq.s32.totalorder %s15, 0
    %p69 = por %p67, %p68
    %p70 = scmp.ne.s32.totalorder %s58, %s59
    %p71 = scmp.eq.s32.totalorder %s16, 3
    %p72 = por %p70, %p71
    %p74 = scmp.ne.s32.totalorder %s59, %s73
    %p75 = scmp.eq.s32.totalorder %s16, 0
    %p76 = por %p74, %p75
    %s77 = ssub.s32 %s17, %s29
    %s78 = ssub.s32 %s18, %s25
    %s79 = sor.u32 %s77, %s78
    %p80 = scmp.eq.s32.totalorder %s79, 0
    %s82 = sadd.s32 %s81, 1
    %s83 = scalar_select %p80, %s81, %s82
    %p86 = pneg %p80
    %p87 = scmp.eq.s32.totalorder %s10, 3
    %p88 = por %p86, %p87
    %p89 = scmp.ne.s32.totalorder %s81, %s84
    %p90 = scmp.eq.s32.totalorder %s10, 0
    %p91 = por %p89, %p90
    %p92 = scmp.ne.s32.totalorder %s81, %s84
    %p93 = scmp.eq.s32.totalorder %s15, 3
    %p94 = por %p92, %p93
    %p95 = scmp.ne.s32.totalorder %s84, %s85
    %p96 = scmp.eq.s32.totalorder %s15, 0
    %p97 = por %p95, %p96
    %p98 = scmp.ne.s32.totalorder %s84, %s85
    %p99 = scmp.eq.s32.totalorder %s16, 3
    %p100 = por %p98, %p99
    %p102 = scmp.ne.s32.totalorder %s85, %s101
    %p103 = scmp.eq.s32.totalorder %s16, 0
    %p104 = por %p102, %p103
    %s105 = ssub.s32 %s17, %s29
    %s106 = ssub.s32 %s18, %s25
    %s107 = sor.u32 %s105, %s106
    %p108 = scmp.eq.s32.totalorder %s107, 0
    %s110 = sadd.s32 %s109, 1
    %s111 = scalar_select %p108, %s109, %s110
    %p114 = pneg %p108
    %p115 = scmp.eq.s32.totalorder %s10, 3
    %p116 = por %p114, %p115
    %p117 = scmp.ne.s32.totalorder %s109, %s112
    %p118 = scmp.eq.s32.totalorder %s10, 0
    %p119 = por %p117, %p118
    %p120 = scmp.ne.s32.totalorder %s109, %s112
    %p121 = scmp.eq.s32.totalorder %s15, 3
    %p122 = por %p120, %p121
    %p123 = scmp.ne.s32.totalorder %s112, %s113
    %p124 = scmp.eq.s32.totalorder %s15, 0
    %p125 = por %p123, %p124
    %p126 = scmp.ne.s32.totalorder %s112, %s113
    %p127 = scmp.eq.s32.totalorder %s16, 3
    %p128 = por %p126, %p127
    %p130 = scmp.ne.s32.totalorder %s113, %s129
    %p131 = scmp.eq.s32.totalorder %s16, 0
    %p132 = por %p130, %p131
    %s133 = ssub.s32 %s17, %s29
    %s134 = ssub.s32 %s18, %s25
    %s135 = sor.u32 %s133, %s134
    %p136 = scmp.eq.s32.totalorder %s135, 0
    %s138 = sadd.s32 %s137, 1
    %s139 = scalar_select %p136, %s137, %s138
    %p142 = pneg %p136
    %p143 = scmp.eq.s32.totalorder %s10, 3
    %p144 = por %p142, %p143
    %p145 = scmp.ne.s32.totalorder %s137, %s140
    %p146 = scmp.eq.s32.totalorder %s10, 0
    %p147 = por %p145, %p146
    %p148 = scmp.ne.s32.totalorder %s137, %s140
    %p149 = scmp.eq.s32.totalorder %s15, 3
    %p150 = por %p148, %p149
    %p151 = scmp.ne.s32.totalorder %s140, %s141
    %p152 = scmp.eq.s32.totalorder %s15, 0
    %p153 = por %p151, %p152
    %p154 = scmp.ne.s32.totalorder %s140, %s141
    %p155 = scmp.eq.s32.totalorder %s16, 3
    %p156 = por %p154, %p155
    %p158 = scmp.ne.s32.totalorder %s141, %s157
    %p159 = scmp.eq.s32.totalorder %s16, 0
    %p160 = por %p158, %p159
    %p161 = scmp.le.s32.totalorder 1, %s10
    %p162 = scmp.lt.s32.totalorder %s10, 5
    %p163 = pnand %p161, %p162
    %p164 = pneg %p163
    // Predicated region
    $region9: #{tpu_custom_call.1} parent=5 // pred_check
      _
    $region10: #{tpu_custom_call.1} parent=5 // pred_check_branch
      %166 = sbr.rel (%p163) target = $region12
    $region11: #{tpu_custom_call.1} parent=5 // pred_region
      %s167 = ssub.s32 %s10, 1
      // Predicated region
      $region13: #{tpu_custom_call.1} parent=11 // pred_check
        %p168 = pneg %p69
      $region14: #{tpu_custom_call.1} parent=11 // pred_check_branch
        %170 = sbr.rel (%p168) target = $region16
      $region15: #{tpu_custom_call.1} parent=11 // pred_region
        _
      $region16: #{tpu_custom_call.1} parent=11 // pred_fallthru
        _
    $region12: #{tpu_custom_call.1} parent=5 // pred_fallthru
      _
    %p171 = scmp.lt.s32.totalorder %s10, 4
    // Predicated region
    $region17: #{tpu_custom_call.1} parent=5 // pred_check
      %p172 = pneg %p171
    $region18: #{tpu_custom_call.1} parent=5 // pred_check_branch
      %174 = sbr.rel (%p172) target = $region20
    $region19: #{tpu_custom_call.1} parent=5 // pred_region
      // Predicated region
      $region21: #{tpu_custom_call.1} parent=19 // pred_check
        %p175 = pneg %p42
      $region22: #{tpu_custom_call.1} parent=19 // pred_check_branch
        %177 = sbr.rel (%p175) target = $region24
      $region23: #{tpu_custom_call.1} parent=19 // pred_region
        %p178 = scmp.lt.s32.totalorder %s17, 1
        %s179 = scalar_select %p178, %s17, 1
        %s180 = smul.addr %s179, 2
        %s181 = scalar_lea.vmem %s0, %s180
      $region24: #{tpu_custom_call.1} parent=19 // pred_fallthru
        _
      // Predicated region
      $region25: #{tpu_custom_call.1} parent=19 // pred_check
        %p182 = pneg %p91
      $region26: #{tpu_custom_call.1} parent=19 // pred_check_branch
        %184 = sbr.rel (%p182) target = $region28
      $region27: #{tpu_custom_call.1} parent=19 // pred_region
        %p185 = scmp.lt.s32.totalorder %s17, 1
        %s186 = scalar_select %p185, %s17, 1
        %p187 = scmp.lt.s32.totalorder %s18, 1
        %s188 = scalar_select %p187, %s18, 1
        %s189 = smul.addr %s186, 2
        %s190 = sadd.s32 %s188, %s189
        %s191 = smul.addr %s190, 4
        %s192 = scalar_lea.vmem %s2, %s191
      $region28: #{tpu_custom_call.1} parent=19 // pred_fallthru
        _
      // Predicated region
      $region29: #{tpu_custom_call.1} parent=19 // pred_check
        %p193 = pneg %p119
      $region30: #{tpu_custom_call.1} parent=19 // pred_check_branch
        %195 = sbr.rel (%p193) target = $region32
      $region31: #{tpu_custom_call.1} parent=19 // pred_region
        %p196 = scmp.lt.s32.totalorder %s17, 1
        %s197 = scalar_select %p196, %s17, 1
        %p198 = scmp.lt.s32.totalorder %s18, 1
        %s199 = scalar_select %p198, %s18, 1
        %s200 = smul.addr %s197, 2
        %s201 = sadd.s32 %s199, %s200
        %s202 = smul.addr %s201, 2
        %s203 = scalar_lea.vmem %s3, %s202
      $region32: #{tpu_custom_call.1} parent=19 // pred_fallthru
        _
    $region20: #{tpu_custom_call.1} parent=5 // pred_fallthru
      _
    %p204 = scmp.le.s32.totalorder 1, %s10
    %p205 = scmp.lt.s32.totalorder %s10, 5
    %p206 = pnand %p204, %p205
    %p207 = pneg %p206
    // Predicated region
    $region33: #{tpu_custom_call.1} parent=5 // pred_check
      _
    $region34: #{tpu_custom_call.1} parent=5 // pred_check_branch
      %209 = sbr.rel (%p206) target = $region36
    $region35: #{tpu_custom_call.1} parent=5 // pred_region
      %s210 = ssub.s32 %s10, 1
      %p211 = scmp.lt.s32.totalorder %s19, 1
      %s212 = scalar_select %p211, %s19, 1
      %s213 = smul.addr %s212, 2
      %s214 = scalar_lea.vmem %s0, %s213
      %p215 = pneg %p48
      %p216 = pneg %p45
      %p217 = pneg %p69
      %p218 = pneg %p66
      %p219 = scmp.lt.s32.totalorder %s19, 1
      %s220 = scalar_select %p219, %s19, 1
      %p221 = scmp.lt.s32.totalorder %s20, 1
      %s222 = scalar_select %p221, %s20, 1
      %s223 = smul.addr %s220, 2
      %s224 = sadd.s32 %s222, %s223
      %s225 = smul.addr %s224, 4
      %s226 = scalar_lea.vmem %s2, %s225
      %p227 = pneg %p97
      %p228 = pneg %p94
      %p229 = scmp.lt.s32.totalorder %s19, 1
      %s230 = scalar_select %p229, %s19, 1
      %p231 = scmp.lt.s32.totalorder %s20, 1
      %s232 = scalar_select %p231, %s20, 1
      %s233 = smul.addr %s230, 2
      %s234 = sadd.s32 %s232, %s233
      %s235 = smul.addr %s234, 2
      %s236 = scalar_lea.vmem %s3, %s235
      %p237 = pneg %p125
      %p238 = pneg %p122
      %p239 = pneg %p153
      %p240 = pneg %p150
      %p241 = scmp.lt.s32.totalorder %s19, 1
      %s242 = scalar_select %p241, %s19, 1
      %p243 = scmp.lt.s32.totalorder %s20, 1
      %s244 = scalar_select %p243, %s20, 1
      %s245 = smul.addr %s242, 2
      %s246 = sadd.s32 %s244, %s245
      %s247 = smul.addr %s246, 4
      %s248 = scalar_lea.vmem %s4, %s247
      %p249 = scmp.lt.s32.totalorder %s19, 1
      %s250 = scalar_select %p249, %s19, 1
      %s251 = smul.addr %s250, 2
      %s252 = scalar_lea.vmem %s0, %s251
      %p253 = scmp.lt.s32.totalorder %s19, 1
      %s254 = scalar_select %p253, %s19, 1
      %p255 = scmp.lt.s32.totalorder %s20, 1
      %s256 = scalar_select %p255, %s20, 1
      %s257 = smul.addr %s254, 2
      %s258 = sadd.s32 %s256, %s257
      %s259 = smul.addr %s258, 4
      %s260 = scalar_lea.vmem %s2, %s259
      %p261 = scmp.lt.s32.totalorder %s19, 1
      %s262 = scalar_select %p261, %s19, 1
      %p263 = scmp.lt.s32.totalorder %s20, 1
      %s264 = scalar_select %p263, %s20, 1
      %s265 = smul.addr %s262, 2
      %s266 = sadd.s32 %s264, %s265
      %s267 = smul.addr %s266, 2
      %s268 = scalar_lea.vmem %s3, %s267
      %p269 = scmp.lt.s32.totalorder %s19, 1
      %s270 = scalar_select %p269, %s19, 1
      %p271 = scmp.lt.s32.totalorder %s20, 1
      %s272 = scalar_select %p271, %s20, 1
      %s273 = smul.addr %s270, 2
      %s274 = sadd.s32 %s272, %s273
      %s275 = smul.addr %s274, 4
      %s276 = scalar_lea.vmem %s4, %s275
      %v278 = vld [vmem:[%s252] sm:$0x3]
      %v279 = vld [vmem:[%s260] sm:$0xf]
      %v280 = vld [vmem:[%s1] sm:$0x7]
      %282 = vset.pattern.permute.xlu0 0
      %283 = vperm.xlu0 %282, %v280
      %v284 = vpop.permute.xlu0 %283
      %vm286 = vcmask 64512
      %v288 = vsel %vm286, %v278, 0
      %vm290 = vcmask 1043456
      %v292 = vsel %vm290, %v279, 0
      %294 = vmatprep.subr.bf16.mxu0 0
      %295 = vmatpush1.bf16.msra.mxu0 %v292
      %296 = vmatprep.subr.bf16.mxu0 0
      %297 = vmatpush1.bf16.msra.mxu0 0
      %298 = vmatprep.subr.bf16.mxu0 0
      %299 = vmatpush1.bf16.msra.mxu0 0
      %300 = vmatprep.subr.bf16.mxu0 0
      %301 = vmatpush1.bf16.msra.mxu0 0
      %302 = vmatprep.subr.bf16.mxu0 0
      %303 = vmatpush1.bf16.msra.mxu0 0
      %304 = vmatprep.subr.bf16.mxu0 0
      %305 = vmatpush1.bf16.msra.mxu0 0
      %306 = vmatprep.subr.bf16.mxu0 0
      %307 = vmatpush1.bf16.msra.mxu0 0
      %308 = vmatprep.subr.bf16.mxu0 0
      %309 = vmatpush1.bf16.msra.mxu0 0
      %310 = vmatprep.subr.bf16.mxu0 0
      %311 = vmatpush1.bf16.msra.mxu0 0
      %312 = vmatprep.subr.bf16.mxu0 0
      %313 = vmatpush1.bf16.msra.mxu0 0
      %314 = vmatprep.subr.bf16.mxu0 0
      %315 = vmatpush1.bf16.msra.mxu0 0
      %316 = vmatprep.subr.bf16.mxu0 0
      %317 = vmatpush1.bf16.msra.mxu0 0
      %318 = vmatprep.subr.bf16.mxu0 0
      %319 = vmatpush1.bf16.msra.mxu0 0
      %320 = vmatprep.subr.bf16.mxu0 0
      %321 = vmatpush1.bf16.msra.mxu0 0
      %322 = vmatprep.subr.bf16.mxu0 0
      %323 = vmatpush1.bf16.msra.mxu0 0
      %324 = vmatprep.subr.bf16.mxu0 0
      %325 = vmatpush1.bf16.msra.mxu0 0
      %326 = vmatprep.mubr.bf16.mxu0 0
      %327 = vmatmul.mubr.bf16.gmra.mrb[0].mxu0 %v288
      %v328 = vpop.f32.mrb[0].mxu0
      %v329 = vadd.f32 %v284, %v328
      %v330 = vpop.f32.mrb[0].mxu0
      %v331 = vpop.f32.mrb[0].mxu0
      %v332 = vpop.f32.mrb[0].mxu0
      %333 = vdwg.mxu0
      %v334 = vld [vmem:[%s268] sm:$0x3]
      %v335 = vunpack.c.l.bf16 %v334
      %v336 = vadd.f32 %v329, %v335
      %337 = vst [vmem:[%s276] sm:$0x7] %v336
      %p338 = scmp.lt.s32.totalorder %s19, 1
      %s339 = scalar_select %p338, %s19, 1
      %p340 = scmp.lt.s32.totalorder %s20, 1
      %s341 = scalar_select %p340, %s20, 1
      %s342 = smul.addr %s339, 2
      %s343 = sadd.s32 %s341, %s342
      %s344 = smul.addr %s343, 4
      %s345 = scalar_lea.vmem %s4, %s344
      // Predicated region
      $region37: #{tpu_custom_call.1} parent=35 // pred_check
        %p346 = pneg %p150
      $region38: #{tpu_custom_call.1} parent=35 // pred_check_branch
        %348 = sbr.rel (%p346) target = $region40
      $region39: #{tpu_custom_call.1} parent=35 // pred_region
        _
      $region40: #{tpu_custom_call.1} parent=35 // pred_fallthru
        _
    $region36: #{tpu_custom_call.1} parent=5 // pred_fallthru
      _
    %p349 = scmp.le.s32.totalorder 2, %s10
    // Predicated region
    $region41: #{tpu_custom_call.1} parent=5 // pred_check
      %p350 = pneg %p349
    $region42: #{tpu_custom_call.1} parent=5 // pred_check_branch
      %352 = sbr.rel (%p350) target = $region44
    $region43: #{tpu_custom_call.1} parent=5 // pred_region
      %s353 = ssub.s32 %s10, 2
      // Predicated region
      $region45: #{tpu_custom_call.1} parent=43 // pred_check
        %p354 = pneg %p156
      $region46: #{tpu_custom_call.1} parent=43 // pred_check_branch
        %356 = sbr.rel (%p354) target = $region48
      $region47: #{tpu_custom_call.1} parent=43 // pred_region
        %p357 = scmp.lt.s32.totalorder %s21, 1
        %s358 = scalar_select %p357, %s21, 1
        %p359 = scmp.lt.s32.totalorder %s22, 1
        %s360 = scalar_select %p359, %s22, 1
        %s361 = smul.addr %s358, 2
        %s362 = sadd.s32 %s360, %s361
        %s363 = smul.addr %s362, 4
        %s364 = scalar_lea.vmem %s4, %s363
      $region48: #{tpu_custom_call.1} parent=43 // pred_fallthru
        _
    $region44: #{tpu_custom_call.1} parent=5 // pred_fallthru
      _
  $region6: #{tpu_custom_call.1} parent=0 // loop_footer
    %s14 = sadd.s32 1, %s10
  $region7: #{tpu_custom_call.1} parent=0 // loop_footer_branch
    %9 = sbr.rel target = $region3
  $region8: #{tpu_custom_call.1} parent=0 // loop_exit
    _

</llo_original>
